<compile_context>
chip_gen: v7x
topology: tpu7x:2x2x1
jax: 0.10.0
libtpu: 0.0.40
codegen_flags: <defaults>
</compile_context>

<pallas_src>
import math
import functools

import jax
import jax.numpy as jnp
from jax import lax
from jax.experimental import pallas as pl
from jax.experimental.pallas import tpu as pltpu


def _pick_tile(dim, target):
    # Use the target tile when it divides the dim; otherwise fall back to the
    # full extent (block == full array dim is always legal).
    return target if (dim > target and dim % target == 0) else dim


def _layernorm(z, g, b, eps):
    mean = jnp.mean(z, axis=-1, keepdims=True)
    cent = z - mean
    var = jnp.mean(cent * cent, axis=-1, keepdims=True)
    inv = lax.rsqrt(var + eps)
    return cent * inv * g + b


# ----------------------------- tiled linear ---------------------------------

def _linear_kernel(x_ref, w_ref, b_ref, o_ref, acc_ref):
    k = pl.program_id(2)

    @pl.when(k == 0)
    def _():
        acc_ref[...] = jnp.zeros_like(acc_ref)

    acc_ref[...] += jnp.dot(x_ref[...], w_ref[...],
                            preferred_element_type=jnp.float32)

    @pl.when(k == pl.num_programs(2) - 1)
    def _():
        o_ref[...] = (acc_ref[...] + b_ref[...]).astype(o_ref.dtype)


def pallas_linear(x, w, b, *, tm=256, tn=256, tk=512):
    """y = x @ w + b, with w stored pre-transposed as (K, N)."""
    M, K = x.shape
    N = w.shape[1]
    tm, tn, tk = _pick_tile(M, tm), _pick_tile(N, tn), _pick_tile(K, tk)
    return pl.pallas_call(
        _linear_kernel,
        out_shape=jax.ShapeDtypeStruct((M, N), x.dtype),
        grid=(M // tm, N // tn, K // tk),
        in_specs=[
            pl.BlockSpec((tm, tk), lambda i, j, k: (i, k)),
            pl.BlockSpec((tk, tn), lambda i, j, k: (k, j)),
            pl.BlockSpec((1, tn), lambda i, j, k: (0, j)),
        ],
        out_specs=pl.BlockSpec((tm, tn), lambda i, j, k: (i, j)),
        scratch_shapes=[pltpu.VMEM((tm, tn), jnp.float32)],
        compiler_params=pltpu.CompilerParams(
            dimension_semantics=("parallel", "parallel", "arbitrary")),
    )(x, w, b.reshape(1, N))


# ------------- fused: out-projection + residual add + LayerNorm -------------

def _proj_add_ln_kernel(ctx_ref, w_ref, b_ref, res_ref, g_ref, bt_ref,
                        o_ref, acc_ref, *, eps):
    k = pl.program_id(1)

    @pl.when(k == 0)
    def _():
        acc_ref[...] = jnp.zeros_like(acc_ref)

    acc_ref[...] += jnp.dot(ctx_ref[...], w_ref[...],
                            preferred_element_type=jnp.float32)

    @pl.when(k == pl.num_programs(1) - 1)
    def _():
        z = acc_ref[...] + b_ref[...] + res_ref[...]
        o_ref[...] = _layernorm(z, g_ref[...], bt_ref[...],
                                eps).astype(o_ref.dtype)


def pallas_proj_add_layernorm(ctx, w, b, res, gamma, beta, *, eps=1e-5,
                              tm=256, tk=512):
    """y = LayerNorm(res + ctx @ w + b) in a single kernel."""
    M, K = ctx.shape
    D = w.shape[1]
    tm, tk = _pick_tile(M, tm), _pick_tile(K, tk)
    kernel = functools.partial(_proj_add_ln_kernel, eps=eps)
    return pl.pallas_call(
        kernel,
        out_shape=jax.ShapeDtypeStruct((M, D), ctx.dtype),
        grid=(M // tm, K // tk),
        in_specs=[
            pl.BlockSpec((tm, tk), lambda i, k: (i, k)),
            pl.BlockSpec((tk, D), lambda i, k: (k, 0)),
            pl.BlockSpec((1, D), lambda i, k: (0, 0)),
            pl.BlockSpec((tm, D), lambda i, k: (i, 0)),
            pl.BlockSpec((1, D), lambda i, k: (0, 0)),
            pl.BlockSpec((1, D), lambda i, k: (0, 0)),
        ],
        out_specs=pl.BlockSpec((tm, D), lambda i, k: (i, 0)),
        scratch_shapes=[pltpu.VMEM((tm, D), jnp.float32)],
        compiler_params=pltpu.CompilerParams(
            dimension_semantics=("parallel", "arbitrary")),
    )(ctx, w, b.reshape(1, D), res, gamma.reshape(1, D), beta.reshape(1, D))


# -------- fused FFN: linear1 + ReLU + linear2 + residual + LayerNorm ---------

def _ffn_kernel(x_ref, w1_ref, b1_ref, w2_ref, b2_ref, g_ref, bt_ref,
                o_ref, acc_ref, *, eps):
    f = pl.program_id(1)

    @pl.when(f == 0)
    def _():
        acc_ref[...] = jnp.zeros_like(acc_ref)

    h = jnp.dot(x_ref[...], w1_ref[...], preferred_element_type=jnp.float32)
    h = jnp.maximum(h + b1_ref[...], 0.0)
    acc_ref[...] += jnp.dot(h, w2_ref[...],
                            preferred_element_type=jnp.float32)

    @pl.when(f == pl.num_programs(1) - 1)
    def _():
        z = acc_ref[...] + b2_ref[...] + x_ref[...]
        o_ref[...] = _layernorm(z, g_ref[...], bt_ref[...],
                                eps).astype(o_ref.dtype)


def pallas_ffn_add_layernorm(x, w1, b1, w2, b2, gamma, beta, *, eps=1e-5,
                             tm=256, tf=512):
    """y = LayerNorm(x + relu(x @ w1 + b1) @ w2 + b2) in a single kernel."""
    M, D = x.shape
    F = w1.shape[1]
    tm, tf = _pick_tile(M, tm), _pick_tile(F, tf)
    kernel = functools.partial(_ffn_kernel, eps=eps)
    return pl.pallas_call(
        kernel,
        out_shape=jax.ShapeDtypeStruct((M, D), x.dtype),
        grid=(M // tm, F // tf),
        in_specs=[
            pl.BlockSpec((tm, D), lambda i, f: (i, 0)),
            pl.BlockSpec((D, tf), lambda i, f: (0, f)),
            pl.BlockSpec((1, tf), lambda i, f: (0, f)),
            pl.BlockSpec((tf, D), lambda i, f: (f, 0)),
            pl.BlockSpec((1, D), lambda i, f: (0, 0)),
            pl.BlockSpec((1, D), lambda i, f: (0, 0)),
            pl.BlockSpec((1, D), lambda i, f: (0, 0)),
        ],
        out_specs=pl.BlockSpec((tm, D), lambda i, f: (i, 0)),
        scratch_shapes=[pltpu.VMEM((tm, D), jnp.float32)],
        compiler_params=pltpu.CompilerParams(
            dimension_semantics=("parallel", "arbitrary")),
    )(x, w1, b1.reshape(1, F), w2, b2.reshape(1, D),
      gamma.reshape(1, D), beta.reshape(1, D))


# --------------------------- attention core ----------------------------------

def _mha_core(q, kv, num_heads, d_k, scale, k_base, v_base):
    """q: (Sq, >=D), kv: (Sk, >=v_base+D). Returns (Sq, D) f32."""
    outs = []
    for h in range(num_heads):                      # static unroll over heads
        lo = h * d_k
        qh = q[:, lo:lo + d_k] * scale              # fold 1/sqrt(d_k) into q
        kh = kv[:, k_base + lo:k_base + lo + d_k]
        vh = kv[:, v_base + lo:v_base + lo + d_k]
        # scores: contract on d_k directly (no in-kernel transpose)
        s = lax.dot_general(qh, kh, (((1,), (1,)), ((), ())),
                            preferred_element_type=jnp.float32)
        m = jnp.max(s, axis=-1, keepdims=True)
        p = jnp.exp(s - m)
        attn = p * pl.reciprocal(jnp.sum(p, axis=-1, keepdims=True),
                                 approx=True)
        outs.append(jnp.dot(attn, vh, preferred_element_type=jnp.float32))
    # One lane-dense store of the full head-merged slab.
    return jnp.concatenate(outs, axis=-1)


def _self_attn_kernel(qkv_ref, o_ref, *, num_heads, d_k, scale):
    # qkv_ref: (1, S, 3D) — Q | K | V packed along the lane axis.
    qkv = qkv_ref[0]
    d_model = num_heads * d_k
    out = _mha_core(qkv, qkv, num_heads, d_k, scale,
                    k_base=d_model, v_base=2 * d_model)
    o_ref[0] = out.astype(o_ref.dtype)


def _cross_attn_kernel(q_ref, kv_ref, o_ref, *, num_heads, d_k, scale):
    # q_ref: (1, Sq, D); kv_ref: (1, Sk, 2D) — K | V packed along the lane axis.
    out = _mha_core(q_ref[0], kv_ref[0], num_heads, d_k, scale,
                    k_base=0, v_base=num_heads * d_k)
    o_ref[0] = out.astype(o_ref.dtype)


def pallas_self_attention_core(qkv, num_heads):
    B, S, D3 = qkv.shape
    D = D3 // 3
    d_k = D // num_heads
    kernel = functools.partial(_self_attn_kernel, num_heads=num_heads,
                               d_k=d_k, scale=1.0 / math.sqrt(d_k))
    return pl.pallas_call(
        kernel,
        out_shape=jax.ShapeDtypeStruct((B, S, D), qkv.dtype),
        grid=(B,),
        in_specs=[pl.BlockSpec((1, S, D3), lambda b: (b, 0, 0))],
        out_specs=pl.BlockSpec((1, S, D), lambda b: (b, 0, 0)),
        compiler_params=pltpu.CompilerParams(
            dimension_semantics=("parallel",)),
    )(qkv)


def pallas_cross_attention_core(q, kv, num_heads):
    B, Sq, D = q.shape
    Sk = kv.shape[1]
    d_k = D // num_heads
    kernel = functools.partial(_cross_attn_kernel, num_heads=num_heads,
                               d_k=d_k, scale=1.0 / math.sqrt(d_k))
    return pl.pallas_call(
        kernel,
        out_shape=jax.ShapeDtypeStruct((B, Sq, D), q.dtype),
        grid=(B,),
        in_specs=[pl.BlockSpec((1, Sq, D), lambda b: (b, 0, 0)),
                  pl.BlockSpec((1, Sk, 2 * D), lambda b: (b, 0, 0))],
        out_specs=pl.BlockSpec((1, Sq, D), lambda b: (b, 0, 0)),
        compiler_params=pltpu.CompilerParams(
            dimension_semantics=("parallel",)),
    )(q, kv)


# ------------------------------ parameters -----------------------------------

def _init_linear(key, fan_in, fan_out):
    # PyTorch nn.Linear init: U(-1/sqrt(fan_in), 1/sqrt(fan_in)).
    bound = 1.0 / math.sqrt(fan_in)
    kw, kb = jax.random.split(key)
    # Stored pre-transposed as (fan_in, fan_out) so y = x @ w + b.
    w = jax.random.uniform(kw, (fan_in, fan_out), jnp.float32, -bound, bound)
    b = jax.random.uniform(kb, (fan_out,), jnp.float32, -bound, bound)
    return w, b


def init_decoder_layer_params(key, d_model, d_ff):
    ks = jax.random.split(key, 10)
    wq, bq = _init_linear(ks[0], d_model, d_model)
    wk, bk = _init_linear(ks[1], d_model, d_model)
    wv, bv = _init_linear(ks[2], d_model, d_model)
    wo, bo = _init_linear(ks[3], d_model, d_model)
    self_attn = {
        "w_qkv": jnp.concatenate([wq, wk, wv], axis=1),   # (D, 3D) fused QKV
        "b_qkv": jnp.concatenate([bq, bk, bv], axis=0),
        "w_out": wo, "b_out": bo,
    }
    wq, bq = _init_linear(ks[4], d_model, d_model)
    wk, bk = _init_linear(ks[5], d_model, d_model)
    wv, bv = _init_linear(ks[6], d_model, d_model)
    wo, bo = _init_linear(ks[7], d_model, d_model)
    cross_attn = {
        "w_q": wq, "b_q": bq,
        "w_kv": jnp.concatenate([wk, wv], axis=1),        # (D, 2D) fused KV
        "b_kv": jnp.concatenate([bk, bv], axis=0),
        "w_out": wo, "b_out": bo,
    }
    w1, b1 = _init_linear(ks[8], d_model, d_ff)
    w2, b2 = _init_linear(ks[9], d_ff, d_model)
    ffn = {"w1": w1, "b1": b1, "w2": w2, "b2": b2}

    def ln():
        return {"gamma": jnp.ones((d_model,), jnp.float32),
                "beta": jnp.zeros((d_model,), jnp.float32)}

    return {"self_attn": self_attn, "cross_attn": cross_attn, "ffn": ffn,
            "norm1": ln(), "norm2": ln(), "norm3": ln()}


# ----------------------------- forward pass ----------------------------------

def decoder_layer_forward(params, x, enc_output, num_heads):
    B, S, D = x.shape
    Se = enc_output.shape[1]
    x2d = x.reshape(B * S, D)
    enc2d = enc_output.reshape(B * Se, D)

    # --- masked self-attention (fused QKV proj; out-proj fused with Add&LN) ---
    p = params["self_attn"]
    qkv = pallas_linear(x2d, p["w_qkv"], p["b_qkv"]).reshape(B, S, 3 * D)
    ctx = pallas_self_attention_core(qkv, num_heads)               # (B, S, D)
    x2d = pallas_proj_add_layernorm(
        ctx.reshape(B * S, D), p["w_out"], p["b_out"], x2d,
        params["norm1"]["gamma"], params["norm1"]["beta"])

    # --- cross-attention with encoder output (fused KV projection) ---
    p = params["cross_attn"]
    qc = pallas_linear(x2d, p["w_q"], p["b_q"]).reshape(B, S, D)
    kvc = pallas_linear(enc2d, p["w_kv"], p["b_kv"]).reshape(B, Se, 2 * D)
    ctx = pallas_cross_attention_core(qc, kvc, num_heads)          # (B, S, D)
    x2d = pallas_proj_add_layernorm(
        ctx.reshape(B * S, D), p["w_out"], p["b_out"], x2d,
        params["norm2"]["gamma"], params["norm2"]["beta"])

    # --- feed-forward: linear1 + ReLU + linear2 + residual + LN in one kernel ---
    p = params["ffn"]
    x2d = pallas_ffn_add_layernorm(
        x2d, p["w1"], p["b1"], p["w2"], p["b2"],
        params["norm3"]["gamma"], params["norm3"]["beta"])

    return x2d.reshape(B, S, D)


# --------------------------------- main ---------------------------------------

if __name__ == "__main__":
    d_model = 32
    num_heads = 4
    d_ff = 64
    batch = 2
    seq = 8
    enc_seq = 8

    key = jax.random.PRNGKey(0)
    kp, kx, ke = jax.random.split(key, 3)

    params = init_decoder_layer_params(kp, d_model, d_ff)
    x = jax.random.normal(kx, (batch, seq, d_model), jnp.float32)
    enc = jax.random.normal(ke, (batch, enc_seq, d_model), jnp.float32)

    out = decoder_layer_forward(params, x, enc, num_heads)
    out = jax.block_until_ready(out)
    assert out.shape == (batch, seq, d_model)
    assert bool(jnp.all(jnp.isfinite(out)))
    print("KERNEL_OK")
</pallas_src>

<mosaic_0001>
module attributes {stable_mosaic.version = 11 : i64} {
  func.func @_linear_kernel(%arg0: i32, %arg1: i32, %arg2: i32, %arg3: memref<16x32xf32, #tpu.memory_space<vmem>>, %arg4: memref<32x96xf32, #tpu.memory_space<vmem>>, %arg5: memref<1x96xf32, #tpu.memory_space<vmem>>, %arg6: memref<16x96xf32, #tpu.memory_space<vmem>>, %arg7: memref<16x96xf32, #tpu.memory_space<vmem>>) attributes {dimension_semantics = [#tpu.dimension_semantics<parallel>, #tpu.dimension_semantics<parallel>, #tpu.dimension_semantics<arbitrary>], iteration_bounds = array<i64: 1, 1, 1>, scalar_prefetch = 0 : i64, scratch_operands = 1 : i64, tpu.core_type = #tpu.core_type<tc>, window_params = [{transform_indices = @transform_0, window_bounds = array<i64: 16, 32>}, {transform_indices = @transform_1, window_bounds = array<i64: 32, 96>}, {transform_indices = @transform_2, window_bounds = array<i64: 1, 96>}, {transform_indices = @transform_3, window_bounds = array<i64: 16, 96>}]} {
    %c0_i32 = arith.constant 0 : i32
    %0 = arith.cmpi eq, %arg2, %c0_i32 : i32
    %1 = arith.extui %0 : i1 to i32
    %c0_i32_0 = arith.constant 0 : i32
    %2 = arith.cmpi ne, %1, %c0_i32_0 : i32
    scf.if %2 {
      %cst_10 = arith.constant 0.000000e+00 : f32
      %12 = vector.broadcast %cst_10 : f32 to vector<16x96xf32>
      %c0_11 = arith.constant 0 : index
      %c0_12 = arith.constant 0 : index
      %13 = vector.load %arg7[%c0_11, %c0_12] : memref<16x96xf32, #tpu.memory_space<vmem>>, vector<16x96xf32>
      tpu.vector_store %arg7[%c0_11, %c0_12], %12 {strides = array<i32>} : memref<16x96xf32, #tpu.memory_space<vmem>>, vector<16x96xf32>,
    } else {
    }
    %c0 = arith.constant 0 : index
    %c0_1 = arith.constant 0 : index
    %3 = vector.load %arg7[%c0, %c0_1] : memref<16x96xf32, #tpu.memory_space<vmem>>, vector<16x96xf32>
    %c0_2 = arith.constant 0 : index
    %c0_3 = arith.constant 0 : index
    %4 = vector.load %arg3[%c0_2, %c0_3] : memref<16x32xf32, #tpu.memory_space<vmem>>, vector<16x32xf32>
    %c0_4 = arith.constant 0 : index
    %c0_5 = arith.constant 0 : index
    %5 = vector.load %arg4[%c0_4, %c0_5] : memref<32x96xf32, #tpu.memory_space<vmem>>, vector<32x96xf32>
    %cst = arith.constant dense<0.000000e+00> : vector<16x96xf32>
    %6 = tpu.matmul %4, %5, %cst {dimension_numbers = #tpu.dot_dimension_numbers<[1], [0], [0], [1], [0, 0, 1, 1], [], []>} : vector<16x32xf32>, vector<32x96xf32>, vector<16x96xf32> -> vector<16x96xf32>
    %7 = arith.addf %3, %6 : vector<16x96xf32>
    %c0_6 = arith.constant 0 : index
    %c0_7 = arith.constant 0 : index
    %8 = vector.load %arg7[%c0_6, %c0_7] : memref<16x96xf32, #tpu.memory_space<vmem>>, vector<16x96xf32>
    tpu.vector_store %arg7[%c0_6, %c0_7], %7 {strides = array<i32>} : memref<16x96xf32, #tpu.memory_space<vmem>>, vector<16x96xf32>,
    %c0_i32_8 = arith.constant 0 : i32
    %9 = arith.cmpi eq, %arg2, %c0_i32_8 : i32
    %10 = arith.extui %9 : i1 to i32
    %c0_i32_9 = arith.constant 0 : i32
    %11 = arith.cmpi ne, %10, %c0_i32_9 : i32
    scf.if %11 {
      %c0_10 = arith.constant 0 : index
      %c0_11 = arith.constant 0 : index
      %12 = vector.load %arg7[%c0_10, %c0_11] : memref<16x96xf32, #tpu.memory_space<vmem>>, vector<16x96xf32>
      %c0_12 = arith.constant 0 : index
      %c0_13 = arith.constant 0 : index
      %13 = vector.load %arg5[%c0_12, %c0_13] : memref<1x96xf32, #tpu.memory_space<vmem>>, vector<1x96xf32>
      %14 = vector.broadcast %13 : vector<1x96xf32> to vector<16x96xf32>
      %15 = arith.addf %12, %14 : vector<16x96xf32>
      %c0_14 = arith.constant 0 : index
      %c0_15 = arith.constant 0 : index
      %16 = vector.load %arg6[%c0_14, %c0_15] : memref<16x96xf32, #tpu.memory_space<vmem>>, vector<16x96xf32>
      tpu.vector_store %arg6[%c0_14, %c0_15], %15 {strides = array<i32>} : memref<16x96xf32, #tpu.memory_space<vmem>>, vector<16x96xf32>,
    } else {
    }
    return
  }
  func.func @transform_0(%arg0: i32, %arg1: i32, %arg2: i32) -> (i32, i32) {
    %c0_i32 = arith.constant 0 : i32
    return %arg0, %arg2 : i32, i32
  }
  func.func @transform_1(%arg0: i32, %arg1: i32, %arg2: i32) -> (i32, i32) {
    %c0_i32 = arith.constant 0 : i32
    return %arg2, %arg1 : i32, i32
  }
  func.func @transform_2(%arg0: i32, %arg1: i32, %arg2: i32) -> (i32, i32) {
    %c0_i32 = arith.constant 0 : i32
    %c0_i32_0 = arith.constant 0 : i32
    return %c0_i32, %arg1 : i32, i32
  }
  func.func @transform_3(%arg0: i32, %arg1: i32, %arg2: i32) -> (i32, i32) {
    %c0_i32 = arith.constant 0 : i32
    return %arg0, %arg1 : i32, i32
  }
}

</mosaic_0001>

<llo_original>
// kernel: tpu_custom_call.1
$region0: #{tpu_custom_call.1}
  #allocation0 [shape = 'u32[]', space=smem, size = 0x4, offset = 0x4, fixed_abs, tag = 'smem constant byte address 0x4 - core index']
  #allocation1 [shape = 'u32[144,128]{1,0:T(1,128)}', space=vmem, size = 0x12000, scoped, tag = 'internal scratch']
  #allocation2 [shape = 'f32[16,96]{1,0:T(8,128)}', space=vmem, size = 0x2000, scoped, tag = 'scratch operand']
  %s0 = inlined_call_operand.hbm [shape: f32[16,32], index: 0, kind: input, shape index: {}]
  %s1 = inlined_call_operand.hbm [shape: f32[32,96], index: 1, kind: input, shape index: {}]
  %s2 = inlined_call_operand.vmem [shape: f32[1,96], index: 2, kind: input, shape index: {}]
  %s3 = inlined_call_operand.hbm [shape: f32[16,96], index: 3, kind: output, shape index: {}]
  %s4 = sld [smem:[#allocation0]]
  $region38: #{tpu_custom_call.1} parent=0
    _
  %s6 = ssub.s32 1, %s4
  %s7 = scalar_select 0, %s6, %s4
  $region1: #{tpu_custom_call.1} parent=0
    #allocation3 [shape = 'u8[8192]{0}', space=vmem, size = 0x2000, scoped, tag = 'input window, operand 0, single buffered']
    #allocation4 [shape = 's32[1]{0}', space=sflag, size = 0x4, scoped, tag = 'scoped memory for tpu_custom_call.1']
    #allocation5 [shape = 's32[1]{0}', space=sflag, size = 0x4, scoped, tag = 'scoped memory for tpu_custom_call.1']
    #allocation6 [shape = 'u8[16384]{0}', space=vmem, size = 0x4000, scoped, tag = 'input window, operand 1, single buffered']
    #allocation7 [shape = 's32[1]{0}', space=sflag, size = 0x4, scoped, tag = 'scoped memory for tpu_custom_call.1']
    #allocation8 [shape = 'u8[8192]{0}', space=vmem, size = 0x2000, scoped, tag = 'output window, operand 0, single buffered']
    %8 = vsyncpa [#allocation4], 0
    %9 = vsyncpa [#allocation7], 0
    %10 = vsyncpa [#allocation5], 0
    // Predicated region
    $region2: #{tpu_custom_call.1} parent=1 // pred_check
      _
    $region3: #{tpu_custom_call.1} parent=1 // pred_check_branch
      %12 = sbr.rel (0) target = $region5
    $region4: #{tpu_custom_call.1} parent=1 // pred_region
      %s14 = ssub.s32 256, 256
      %15 = vsyncadd [#allocation4], %s14
      %s16 = sshll.u32 [#allocation3], 4
      %s17 = int_to_ptr.vmem [resolvable:$true] %s16
      %22 = dma.hbm_to_vmem [thread:$0]  %s0, 256, %s17, [#allocation4], 128, 128, 8
    $region5: #{tpu_custom_call.1} parent=1 // pred_fallthru
      _
    // Predicated region
    $region6: #{tpu_custom_call.1} parent=1 // pred_check
      _
    $region7: #{tpu_custom_call.1} parent=1 // pred_check_branch
      %24 = sbr.rel (0) target = $region9
    $region8: #{tpu_custom_call.1} parent=1 // pred_region
      %s26 = ssub.s32 512, 512
      %27 = vsyncadd [#allocation7], %s26
      %s28 = sshll.u32 [#allocation6], 4
      %s29 = int_to_ptr.vmem [resolvable:$true] %s28
      %34 = dma.hbm_to_vmem [thread:$0]  %s1, 512, %s29, [#allocation7], 128, 128, 8
    $region9: #{tpu_custom_call.1} parent=1 // pred_fallthru
      _
    // Predicated region
    $region10: #{tpu_custom_call.1} parent=1 // pred_check
      _
    $region11: #{tpu_custom_call.1} parent=1 // pred_check_branch
      %36 = sbr.rel (0) target = $region13
    $region12: #{tpu_custom_call.1} parent=1 // pred_region
      _
    $region13: #{tpu_custom_call.1} parent=1 // pred_fallthru
      _
    // Predicated region
    $region14: #{tpu_custom_call.1} parent=1 // pred_check
      _
    $region15: #{tpu_custom_call.1} parent=1 // pred_check_branch
      %38 = sbr.rel (0) target = $region17
    $region16: #{tpu_custom_call.1} parent=1 // pred_region
      %39 = dma.done [#allocation4], 256
    $region17: #{tpu_custom_call.1} parent=1 // pred_fallthru
      _
    // Predicated region
    $region18: #{tpu_custom_call.1} parent=1 // pred_check
      _
    $region19: #{tpu_custom_call.1} parent=1 // pred_check_branch
      %41 = sbr.rel (0) target = $region21
    $region20: #{tpu_custom_call.1} parent=1 // pred_region
      %42 = dma.done [#allocation7], 512
    $region21: #{tpu_custom_call.1} parent=1 // pred_fallthru
      _
    %p43 = scmp.eq.s32.totalorder 0, 0
    // Predicated region
    $region22: #{tpu_custom_call.1} parent=1 // pred_check
      %p44 = pneg %p43
    $region23: #{tpu_custom_call.1} parent=1 // pred_check_branch
      %46 = sbr.rel (%p44) target = $region25
    $region24: #{tpu_custom_call.1} parent=1 // pred_region
      %vm47 = vcmask 785408
      %48 = vst.msk [vmem:[#allocation2] sm:$0xff] %vm47, 0.0
      %49 = vst.msk [vmem:[#allocation2 + $0x8] sm:$0xff] %vm47, 0.0
    $region25: #{tpu_custom_call.1} parent=1 // pred_fallthru
      _
    %v50 = vld [vmem:[#allocation2] sm:$0xff]
    %v51 = vld [vmem:[#allocation2 + $0x8] sm:$0xff]
    %v52 = vld [vmem:[#allocation3] sm:$0xff]
    %v53 = vld [vmem:[#allocation3 + $0x8] sm:$0xff]
    %v54 = vld [vmem:[#allocation6] sm:$0xff]
    %v55 = vld [vmem:[#allocation6 + $0x8] sm:$0xff]
    %v56 = vld [vmem:[#allocation6 + $0x10] sm:$0xff]
    %v57 = vld [vmem:[#allocation6 + $0x18] sm:$0xff]
    %vm58 = vcmask 261120
    %v60 = vsel %vm58, %v52, 0
    %v63 = vsel %vm58, %v53, 0
    %65 = vmatprep.subr.mxu0 0.0
    %66 = vmatpush1.msra.mxu0 %v54
    %67 = vmatprep.subr.mxu0 0.0
    %68 = vmatpush1.msra.mxu0 %v55
    %69 = vmatprep.subr.mxu0 0.0
    %70 = vmatpush1.msra.mxu0 %v56
    %71 = vmatprep.subr.mxu0 0.0
    %72 = vmatpush1.msra.mxu0 %v57
    %73 = vmatprep.subr.mxu0 0.0
    %74 = vmatpush1.msra.mxu0 0.0
    %75 = vmatprep.subr.mxu0 0.0
    %76 = vmatpush1.msra.mxu0 0.0
    %77 = vmatprep.subr.mxu0 0.0
    %78 = vmatpush1.msra.mxu0 0.0
    %79 = vmatprep.subr.mxu0 0.0
    %80 = vmatpush1.msra.mxu0 0.0
    %81 = vmatprep.subr.mxu0 0.0
    %82 = vmatpush1.msra.mxu0 0.0
    %83 = vmatprep.subr.mxu0 0.0
    %84 = vmatpush1.msra.mxu0 0.0
    %85 = vmatprep.subr.mxu0 0.0
    %86 = vmatpush1.msra.mxu0 0.0
    %87 = vmatprep.subr.mxu0 0.0
    %88 = vmatpush1.msra.mxu0 0.0
    %89 = vmatprep.subr.mxu0 0.0
    %90 = vmatpush1.msra.mxu0 0.0
    %91 = vmatprep.subr.mxu0 0.0
    %92 = vmatpush1.msra.mxu0 0.0
    %93 = vmatprep.subr.mxu0 0.0
    %94 = vmatpush1.msra.mxu0 0.0
    %95 = vmatprep.subr.mxu0 0.0
    %96 = vmatpush1.msra.mxu0 0.0
    %97 = vmatprep.subr.mxu0 0.0
    %98 = vmatpush1.msra.mxu0 0.0
    %99 = vmatprep.subr.mxu0 0.0
    %100 = vmatpush1.msra.mxu0 0.0
    %101 = vmatprep.subr.mxu0 0.0
    %102 = vmatpush1.msra.mxu0 0.0
    %103 = vmatprep.subr.mxu0 0.0
    %104 = vmatpush1.msra.mxu0 0.0
    %105 = vmatprep.subr.mxu0 0.0
    %106 = vmatpush1.msra.mxu0 0.0
    %107 = vmatprep.subr.mxu0 0.0
    %108 = vmatpush1.msra.mxu0 0.0
    %109 = vmatprep.subr.mxu0 0.0
    %110 = vmatpush1.msra.mxu0 0.0
    %111 = vmatprep.subr.mxu0 0.0
    %112 = vmatpush1.msra.mxu0 0.0
    %113 = vmatprep.subr.mxu0 0.0
    %114 = vmatpush1.msra.mxu0 0.0
    %115 = vmatprep.subr.mxu0 0.0
    %116 = vmatpush1.msra.mxu0 0.0
    %117 = vmatprep.subr.mxu0 0.0
    %118 = vmatpush1.msra.mxu0 0.0
    %119 = vmatprep.subr.mxu0 0.0
    %120 = vmatpush1.msra.mxu0 0.0
    %121 = vmatprep.subr.mxu0 0.0
    %122 = vmatpush1.msra.mxu0 0.0
    %123 = vmatprep.subr.mxu0 0.0
    %124 = vmatpush1.msra.mxu0 0.0
    %125 = vmatprep.subr.mxu0 0.0
    %126 = vmatpush1.msra.mxu0 0.0
    %127 = vmatprep.subr.mxu0 0.0
    %128 = vmatpush1.msra.mxu0 0.0
    %129 = vmatprep.mubr.f32.mxu0 0.0
    %130 = vmatmul.mubr.f32.gmra.mrb[0].mxu0 %v60
    %v131 = vpop.f32.mrb[0].mxu0
    %v132 = vadd.f32 0.0, %v131
    %v133 = vpop.f32.mrb[0].mxu0
    %134 = vmatprep.mubr.f32.mxu0 0.0
    %135 = vmatmul.mubr.f32.gmra.mrb[0].mxu0 %v63
    %v136 = vpop.f32.mrb[0].mxu0
    %v137 = vadd.f32 0.0, %v136
    %v138 = vpop.f32.mrb[0].mxu0
    %139 = vdwg.mxu0
    %v140 = vadd.f32 %v50, %v132
    %v141 = vadd.f32 %v51, %v137
    %vm142 = vcmask 785408
    %143 = vst.msk [vmem:[#allocation2] sm:$0xff] %vm142, %v140
    %144 = vst.msk [vmem:[#allocation2 + $0x8] sm:$0xff] %vm142, %v141
    // Predicated region
    $region26: #{tpu_custom_call.1} parent=1 // pred_check
      %p145 = pneg %p43
    $region27: #{tpu_custom_call.1} parent=1 // pred_check_branch
      %147 = sbr.rel (%p145) target = $region29
    $region28: #{tpu_custom_call.1} parent=1 // pred_region
      %v148 = vld [vmem:[#allocation2] sm:$0xff]
      %v149 = vld [vmem:[#allocation2 + $0x8] sm:$0xff]
      %v150 = vld [vmem:[%s2] sm:$0x1]
      %v152 = vlaneseq
      %v153 = vshrl.u32 %v152, 7
      %v154 = vsub.s32 0, %v153
      %v155 = vrot.slane %v150, %v154
      %v157 = vadd.f32 %v148, %v155
      %v158 = vadd.f32 %v149, %v155
      %159 = vst.msk [vmem:[#allocation8] sm:$0xff] %vm142, %v157
      %160 = vst.msk [vmem:[#allocation8 + $0x8] sm:$0xff] %vm142, %v158
    $region29: #{tpu_custom_call.1} parent=1 // pred_fallthru
      _
    // Predicated region
    $region30: #{tpu_custom_call.1} parent=1 // pred_check
      _
    $region31: #{tpu_custom_call.1} parent=1 // pred_check_branch
      %162 = sbr.rel (0) target = $region33
    $region32: #{tpu_custom_call.1} parent=1 // pred_region
      %s164 = ssub.s32 256, 256
      %165 = vsyncadd [#allocation5], %s164
      %s166 = sshll.u32 [#allocation8], 4
      %s167 = int_to_ptr.vmem [resolvable:$true] %s166
      %172 = dma.vmem_to_hbm [thread:$0]  %s167, 256, %s3, [#allocation5], 128, 128, 8
    $region33: #{tpu_custom_call.1} parent=1 // pred_fallthru
      _
    // Predicated region
    $region34: #{tpu_custom_call.1} parent=1 // pred_check
      _
    $region35: #{tpu_custom_call.1} parent=1 // pred_check_branch
      %174 = sbr.rel (0) target = $region37
    $region36: #{tpu_custom_call.1} parent=1 // pred_region
      %175 = dma.done [#allocation5], 256
    $region37: #{tpu_custom_call.1} parent=1 // pred_fallthru
      _
    %176 = vsyncpa [#allocation4], 1
    %177 = vsyncpa [#allocation7], 1
    %178 = vsyncpa [#allocation5], 1

</llo_original>
